<compile_context>
chip_gen: v6e
topology: v6e:2x2x1
jax: 0.10.0
libtpu: 0.0.40
codegen_flags: <defaults>
</compile_context>

<pallas_src>
import jax
import jax.numpy as jnp
from jax import lax
from jax.experimental import pallas as pl
from jax.experimental.pallas import tpu as pltpu  # noqa: F401  (TPU backend)

# ---- model hyper-parameters (small, consistent with the module) ----
N_HEAD = 2
D_HEAD = 16
D_MODEL = 32
D_INNER = 64
SEQ = 8
BATCH = 2
LN_EPS = 1e-5
SCALE = 1.0 / (D_HEAD ** 0.5)

HD = N_HEAD * D_HEAD            # 32
_K_OFF = HD                     # 32   K block start in qkv
_V_OFF = 2 * HD                 # 64   V block start in qkv
_WO_OFF = 3 * HD                # 96   Wo^T lanes in wA
_W1_OFF = 4 * HD                # 128  W1^T lanes in wA (lane-tile boundary)
ROWS = BATCH * SEQ              # 16


def _layer_norm(x, gamma, beta):
    # x: (N, D) f32, gamma/beta: (1, D) f32
    mean = jnp.mean(x, axis=-1, keepdims=True)
    var = jnp.mean((x - mean) ** 2, axis=-1, keepdims=True)
    return (x - mean) * lax.rsqrt(var + LN_EPS) * gamma + beta


def encoder_layer_kernel(h_ref, wA_ref, w2_ref, vec_ref, out_ref):
    h = h_ref[...]                                  # (B*S, D) f32
    wA = wA_ref[...]                                # (32, 192) bf16 [Wq^T|Wkv^T|Wo^T|W1^T]
    w2_t = w2_ref[...]                              # (64, 32) bf16
    vec = vec_ref[...]                              # (8, 64) f32 packed vectors

    ln1_g = vec[0:1, :D_MODEL]
    ln1_b = vec[1:2, :D_MODEL]
    b1 = vec[2:3, :D_INNER]
    b2 = vec[3:4, :D_MODEL]
    ln2_g = vec[4:5, :D_MODEL]
    ln2_b = vec[5:6, :D_MODEL]

    # ---- fused QKV projection: full 128-lane weight tile (cols 96:128 are
    #      h @ Wo^T and are simply ignored — MXU pads to 128 lanes anyway).
    qkv = jnp.dot(h.astype(jnp.bfloat16), wA[:, :_W1_OFF],
                  preferred_element_type=jnp.float32)        # (16, 128) f32

    # fold the 1/sqrt(d_head) scale into Q (exact power of two, no bf16 loss)
    q_bf = (qkv[:, :HD] * SCALE).astype(jnp.bfloat16)        # (16, 32)
    k_bf = qkv[:, _K_OFF:_K_OFF + HD].astype(jnp.bfloat16)   # (16, 32)
    v_bf = qkv[:, _V_OFF:_V_OFF + HD].astype(jnp.bfloat16)   # (16, 32)

    # ---- per-(batch, head) score tiles (static unroll: B=H=2),
    #      softmax batched over one (B*H*S, S) sublane stack.
    score_tiles = []
    v_tiles = []
    for b in range(BATCH):                          # tiny static loops
        r0 = b * SEQ
        for hh in range(N_HEAD):
            c = hh * D_HEAD
            qh = q_bf[r0:r0 + SEQ, c:c + D_HEAD]             # (S, Dh)
            kh = k_bf[r0:r0 + SEQ, c:c + D_HEAD]             # (S, Dh)
            v_tiles.append(v_bf[r0:r0 + SEQ, c:c + D_HEAD])  # (S, Dh)
            # contract last axes (no transpose / vxpose)
            score_tiles.append(
                lax.dot_general(qh, kh, (((1,), (1,)), ((), ())),
                                preferred_element_type=jnp.float32))
    scores = jnp.concatenate(score_tiles, axis=0)            # (32, 8) f32
    scores = scores - jnp.max(scores, axis=-1, keepdims=True)
    e = jnp.exp(scores)
    probs = (e / jnp.sum(e, axis=-1, keepdims=True)).astype(jnp.bfloat16)

    # ---- contexts assembled into (B*S, H*Dh); ONE fused Wo matmul
    ctx_rows = []
    for b in range(BATCH):
        heads = []
        for hh in range(N_HEAD):
            t = b * N_HEAD + hh
            p = probs[t * SEQ:(t + 1) * SEQ, :]              # (S, S) bf16
            heads.append(jnp.dot(p, v_tiles[t],
                                 preferred_element_type=jnp.float32))  # (S, Dh)
        ctx_rows.append(jnp.concatenate(heads, axis=1))      # (S, H*Dh) lane concat
    ctx = jnp.concatenate(ctx_rows, axis=0)                  # (16, 32) f32
    attn_out = jnp.dot(ctx.astype(jnp.bfloat16),
                       wA[:, _WO_OFF:_WO_OFF + D_MODEL],
                       preferred_element_type=jnp.float32)   # (16, 32) f32

    # dropout == identity; residual + LN in f32
    x = _layer_norm(h + attn_out, ln1_g, ln1_b)              # (16, 32)

    # ---- PositionwiseFF (post-lnorm)
    hid = jnp.maximum(
        jnp.dot(x.astype(jnp.bfloat16), wA[:, _W1_OFF:],
                preferred_element_type=jnp.float32) + b1, 0.0)       # (16, 64)
    core = jnp.dot(hid.astype(jnp.bfloat16), w2_t,
                   preferred_element_type=jnp.float32) + b2          # (16, 32)
    out_ref[...] = _layer_norm(x + core, ln2_g, ln2_b)


def pack_params(params):
    """One-time packing (hoisted out of the per-call path).

    Weights are pre-transposed to (in, out) and packed into a single bf16 slab
    wA = [Wq^T | Wkv^T | Wo^T | W1^T] (32, 192); W2^T is a separate (64, 32)
    bf16 slab; LN scales/biases and the FF biases are packed into one f32
    (8, 64) slab.  Call this once at init, not per forward."""
    wA = jnp.concatenate(
        [params["wq"].T, params["wkv"].T, params["wo"].T, params["w1"].T],
        axis=1).astype(jnp.bfloat16)                         # (32, 192)
    w2_t = params["w2"].T.astype(jnp.bfloat16)               # (64, 32)

    vec = jnp.zeros((8, D_INNER), jnp.float32)
    vec = vec.at[0, :D_MODEL].set(params["ln1_g"][0])
    vec = vec.at[1, :D_MODEL].set(params["ln1_b"][0])
    vec = vec.at[2, :D_INNER].set(params["b1"][0])
    vec = vec.at[3, :D_MODEL].set(params["b2"][0])
    vec = vec.at[4, :D_MODEL].set(params["ln2_g"][0])
    vec = vec.at[5, :D_MODEL].set(params["ln2_b"][0])
    return wA, w2_t, vec


_COST = pl.CostEstimate(
    flops=(2 * ROWS * D_MODEL * 128                      # fused QKV (+ignored Wo lanes)
           + BATCH * N_HEAD * 4 * SEQ * SEQ * D_HEAD     # scores + prob @ V
           + 2 * ROWS * HD * D_MODEL                     # fused Wo projection
           + 4 * ROWS * D_MODEL * D_INNER),              # FF (two matmuls)
    transcendentals=BATCH * N_HEAD * SEQ * SEQ + 2 * ROWS,
    bytes_accessed=(4 * (2 * ROWS * D_MODEL + 8 * D_INNER)   # f32 act/vec
                    + 2 * (32 * 192 + 64 * 32)))             # bf16 weights


@jax.jit
def encoder_layer(h_sbd, wA, w2_t, vec):
    """h_sbd: (S, B, D) f32 -> (S, B, D) f32.

    The (S,B,D) <-> (B*S,D) relayouts live under this jit so XLA fuses them
    with the pallas_call boundary instead of paying separate dispatches."""
    S, B, D = h_sbd.shape
    h_flat = jnp.transpose(h_sbd, (1, 0, 2)).reshape(B * S, D)   # batch-major rows
    out_flat = pl.pallas_call(
        encoder_layer_kernel,
        out_shape=jax.ShapeDtypeStruct((B * S, D), jnp.float32),
        cost_estimate=_COST,
    )(h_flat, wA, w2_t, vec)
    return out_flat.reshape(B, S, D).transpose(1, 0, 2)


def init_params(key):
    ks = jax.random.split(key, 8)
    s = 0.05
    return {
        "wq":  s * jax.random.normal(ks[0], (N_HEAD * D_HEAD, D_MODEL), jnp.float32),
        "wkv": s * jax.random.normal(ks[1], (2 * N_HEAD * D_HEAD, D_MODEL), jnp.float32),
        "wo":  s * jax.random.normal(ks[2], (D_MODEL, N_HEAD * D_HEAD), jnp.float32),
        "ln1_g": jnp.ones((1, D_MODEL), jnp.float32),
        "ln1_b": jnp.zeros((1, D_MODEL), jnp.float32),
        "w1":  s * jax.random.normal(ks[3], (D_INNER, D_MODEL), jnp.float32),
        "b1":  s * jax.random.normal(ks[4], (1, D_INNER), jnp.float32),
        "w2":  s * jax.random.normal(ks[5], (D_MODEL, D_INNER), jnp.float32),
        "b2":  s * jax.random.normal(ks[6], (1, D_MODEL), jnp.float32),
        "ln2_g": jnp.ones((1, D_MODEL), jnp.float32),
        "ln2_b": jnp.zeros((1, D_MODEL), jnp.float32),
    }


def reference_forward(h_sbd, p):
    """Pure-JAX f32 reference mirroring the PyTorch forward (eval mode)."""
    def ln(x, g, b):
        m = jnp.mean(x, -1, keepdims=True)
        v = jnp.mean((x - m) ** 2, -1, keepdims=True)
        return (x - m) * lax.rsqrt(v + LN_EPS) * g[0] + b[0]

    S, B, D = h_sbd.shape
    q = h_sbd @ p["wq"].T
    kv = h_sbd @ p["wkv"].T
    k, v = jnp.split(kv, 2, axis=-1)
    q = q.reshape(S, B, N_HEAD, D_HEAD)
    k = k.reshape(S, B, N_HEAD, D_HEAD)
    v = v.reshape(S, B, N_HEAD, D_HEAD)
    score = jnp.einsum("ibnd,jbnd->ijbn", q, k) * SCALE
    prob = jax.nn.softmax(score, axis=1)
    vec = jnp.einsum("ijbn,jbnd->ibnd", prob, v).reshape(S, B, N_HEAD * D_HEAD)
    attn_out = vec @ p["wo"].T
    x = ln(h_sbd + attn_out, p["ln1_g"], p["ln1_b"])
    hid = jnp.maximum(x @ p["w1"].T + p["b1"][0], 0.0)
    core = hid @ p["w2"].T + p["b2"][0]
    return ln(x + core, p["ln2_g"], p["ln2_b"])


if __name__ == "__main__":
    key = jax.random.PRNGKey(0)
    k_inp, k_par = jax.random.split(key)
    h = jax.random.normal(k_inp, (SEQ, BATCH, D_MODEL), jnp.float32)
    params = init_params(k_par)

    packed = pack_params(params)        # one-time packing, outside the forward path

    out = jax.block_until_ready(encoder_layer(h, *packed))
    ref = reference_forward(h, params)

    assert out.shape == (SEQ, BATCH, D_MODEL)
    # MXU operands are bf16 (f32 accumulation); tolerance reflects bf16
    # operand rounding.  Softmax / LN / residuals stay f32 with exact divide.
    assert jnp.allclose(out, ref, atol=1e-2, rtol=1e-2), "mismatch vs reference"
    print("KERNEL_OK")
</pallas_src>

<mosaic_0001>
module attributes {stable_mosaic.version = 11 : i64} {
  func.func @encoder_layer_kernel(%arg0: memref<16x32xf32, #tpu.memory_space<vmem>>, %arg1: memref<32x192xbf16, #tpu.memory_space<vmem>>, %arg2: memref<64x32xbf16, #tpu.memory_space<vmem>>, %arg3: memref<8x64xf32, #tpu.memory_space<vmem>>, %arg4: memref<16x32xf32, #tpu.memory_space<vmem>>) attributes {dimension_semantics = [], scalar_prefetch = 0 : i64, scratch_operands = 0 : i64, tpu.core_type = #tpu.core_type<tc>} {
    %c0 = arith.constant 0 : index
    %c0_0 = arith.constant 0 : index
    %0 = vector.load %arg0[%c0, %c0_0] : memref<16x32xf32, #tpu.memory_space<vmem>>, vector<16x32xf32>
    %c0_1 = arith.constant 0 : index
    %c0_2 = arith.constant 0 : index
    %1 = vector.load %arg1[%c0_1, %c0_2] : memref<32x192xbf16, #tpu.memory_space<vmem>>, vector<32x192xbf16>
    %c0_3 = arith.constant 0 : index
    %c0_4 = arith.constant 0 : index
    %2 = vector.load %arg2[%c0_3, %c0_4] : memref<64x32xbf16, #tpu.memory_space<vmem>>, vector<64x32xbf16>
    %c0_5 = arith.constant 0 : index
    %c0_6 = arith.constant 0 : index
    %3 = vector.load %arg3[%c0_5, %c0_6] : memref<8x64xf32, #tpu.memory_space<vmem>>, vector<8x64xf32>
    %4 = vector.extract_strided_slice %3 {offsets = [0, 0], sizes = [1, 32], strides = [1, 1]} : vector<8x64xf32> to vector<1x32xf32>
    %5 = vector.extract_strided_slice %3 {offsets = [1, 0], sizes = [1, 32], strides = [1, 1]} : vector<8x64xf32> to vector<1x32xf32>
    %6 = vector.extract_strided_slice %3 {offsets = [2, 0], sizes = [1, 64], strides = [1, 1]} : vector<8x64xf32> to vector<1x64xf32>
    %7 = vector.extract_strided_slice %3 {offsets = [3, 0], sizes = [1, 32], strides = [1, 1]} : vector<8x64xf32> to vector<1x32xf32>
    %8 = vector.extract_strided_slice %3 {offsets = [4, 0], sizes = [1, 32], strides = [1, 1]} : vector<8x64xf32> to vector<1x32xf32>
    %9 = vector.extract_strided_slice %3 {offsets = [5, 0], sizes = [1, 32], strides = [1, 1]} : vector<8x64xf32> to vector<1x32xf32>
    %10 = arith.truncf %0 : vector<16x32xf32> to vector<16x32xbf16>
    %11 = vector.extract_strided_slice %1 {offsets = [0, 0], sizes = [32, 128], strides = [1, 1]} : vector<32x192xbf16> to vector<32x128xbf16>
    %cst = arith.constant dense<0.000000e+00> : vector<16x128xf32>
    %12 = tpu.matmul %10, %11, %cst {dimension_numbers = #tpu.dot_dimension_numbers<[1], [0], [0], [1], [0, 0, 1, 1], [], []>} : vector<16x32xbf16>, vector<32x128xbf16>, vector<16x128xf32> -> vector<16x128xf32>
    %13 = vector.extract_strided_slice %12 {offsets = [0, 0], sizes = [16, 32], strides = [1, 1]} : vector<16x128xf32> to vector<16x32xf32>
    %cst_7 = arith.constant 2.500000e-01 : f32
    %14 = vector.broadcast %cst_7 : f32 to vector<16x32xf32>
    %15 = arith.mulf %13, %14 : vector<16x32xf32>
    %16 = arith.truncf %15 : vector<16x32xf32> to vector<16x32xbf16>
    %17 = vector.extract_strided_slice %12 {offsets = [0, 32], sizes = [16, 32], strides = [1, 1]} : vector<16x128xf32> to vector<16x32xf32>
    %18 = arith.truncf %17 : vector<16x32xf32> to vector<16x32xbf16>
    %19 = vector.extract_strided_slice %12 {offsets = [0, 64], sizes = [16, 32], strides = [1, 1]} : vector<16x128xf32> to vector<16x32xf32>
    %20 = arith.truncf %19 : vector<16x32xf32> to vector<16x32xbf16>
    %21 = vector.extract_strided_slice %16 {offsets = [0, 0], sizes = [8, 16], strides = [1, 1]} : vector<16x32xbf16> to vector<8x16xbf16>
    %22 = vector.extract_strided_slice %18 {offsets = [0, 0], sizes = [8, 16], strides = [1, 1]} : vector<16x32xbf16> to vector<8x16xbf16>
    %23 = vector.extract_strided_slice %20 {offsets = [0, 0], sizes = [8, 16], strides = [1, 1]} : vector<16x32xbf16> to vector<8x16xbf16>
    %cst_8 = arith.constant dense<0.000000e+00> : vector<8x8xf32>
    %24 = tpu.matmul %21, %22, %cst_8 {dimension_numbers = #tpu.dot_dimension_numbers<[1], [1], [0], [0], [0, 0, 1, 0], [], []>} : vector<8x16xbf16>, vector<8x16xbf16>, vector<8x8xf32> -> vector<8x8xf32>
    %25 = vector.extract_strided_slice %16 {offsets = [0, 16], sizes = [8, 16], strides = [1, 1]} : vector<16x32xbf16> to vector<8x16xbf16>
    %26 = vector.extract_strided_slice %18 {offsets = [0, 16], sizes = [8, 16], strides = [1, 1]} : vector<16x32xbf16> to vector<8x16xbf16>
    %27 = vector.extract_strided_slice %20 {offsets = [0, 16], sizes = [8, 16], strides = [1, 1]} : vector<16x32xbf16> to vector<8x16xbf16>
    %cst_9 = arith.constant dense<0.000000e+00> : vector<8x8xf32>
    %28 = tpu.matmul %25, %26, %cst_9 {dimension_numbers = #tpu.dot_dimension_numbers<[1], [1], [0], [0], [0, 0, 1, 0], [], []>} : vector<8x16xbf16>, vector<8x16xbf16>, vector<8x8xf32> -> vector<8x8xf32>
    %29 = vector.extract_strided_slice %16 {offsets = [8, 0], sizes = [8, 16], strides = [1, 1]} : vector<16x32xbf16> to vector<8x16xbf16>
    %30 = vector.extract_strided_slice %18 {offsets = [8, 0], sizes = [8, 16], strides = [1, 1]} : vector<16x32xbf16> to vector<8x16xbf16>
    %31 = vector.extract_strided_slice %20 {offsets = [8, 0], sizes = [8, 16], strides = [1, 1]} : vector<16x32xbf16> to vector<8x16xbf16>
    %cst_10 = arith.constant dense<0.000000e+00> : vector<8x8xf32>
    %32 = tpu.matmul %29, %30, %cst_10 {dimension_numbers = #tpu.dot_dimension_numbers<[1], [1], [0], [0], [0, 0, 1, 0], [], []>} : vector<8x16xbf16>, vector<8x16xbf16>, vector<8x8xf32> -> vector<8x8xf32>
    %33 = vector.extract_strided_slice %16 {offsets = [8, 16], sizes = [8, 16], strides = [1, 1]} : vector<16x32xbf16> to vector<8x16xbf16>
    %34 = vector.extract_strided_slice %18 {offsets = [8, 16], sizes = [8, 16], strides = [1, 1]} : vector<16x32xbf16> to vector<8x16xbf16>
    %35 = vector.extract_strided_slice %20 {offsets = [8, 16], sizes = [8, 16], strides = [1, 1]} : vector<16x32xbf16> to vector<8x16xbf16>
    %cst_11 = arith.constant dense<0.000000e+00> : vector<8x8xf32>
    %36 = tpu.matmul %33, %34, %cst_11 {dimension_numbers = #tpu.dot_dimension_numbers<[1], [1], [0], [0], [0, 0, 1, 0], [], []>} : vector<8x16xbf16>, vector<8x16xbf16>, vector<8x8xf32> -> vector<8x8xf32>
    %37 = tpu.concatenate %24, %28, %32, %36 in 0 : vector<8x8xf32>, vector<8x8xf32>, vector<8x8xf32>, vector<8x8xf32> -> vector<32x8xf32>
    %cst_12 = arith.constant dense<0xFF800000> : vector<32xf32>
    %38 = vector.multi_reduction <maximumf>, %37, %cst_12 [1] : vector<32x8xf32> to vector<32xf32>
    %39 = vector.shape_cast %38 : vector<32xf32> to vector<32x1xf32>
    %40 = vector.broadcast %39 : vector<32x1xf32> to vector<32x8xf32>
    %41 = arith.subf %37, %40 : vector<32x8xf32>
    %42 = math.exp %41 : vector<32x8xf32>
    %cst_13 = arith.constant dense<0.000000e+00> : vector<32xf32>
    %43 = vector.multi_reduction <add>, %42, %cst_13 [1] : vector<32x8xf32> to vector<32xf32>
    %44 = vector.shape_cast %43 : vector<32xf32> to vector<32x1xf32>
    %45 = vector.broadcast %44 : vector<32x1xf32> to vector<32x8xf32>
    %46 = arith.divf %42, %45 : vector<32x8xf32>
    %47 = arith.truncf %46 : vector<32x8xf32> to vector<32x8xbf16>
    %48 = vector.extract_strided_slice %47 {offsets = [0, 0], sizes = [8, 8], strides = [1, 1]} : vector<32x8xbf16> to vector<8x8xbf16>
    %cst_14 = arith.constant dense<0.000000e+00> : vector<8x16xf32>
    %49 = tpu.matmul %48, %23, %cst_14 {dimension_numbers = #tpu.dot_dimension_numbers<[1], [0], [0], [1], [0, 0, 1, 1], [], []>} : vector<8x8xbf16>, vector<8x16xbf16>, vector<8x16xf32> -> vector<8x16xf32>
    %50 = vector.extract_strided_slice %47 {offsets = [8, 0], sizes = [8, 8], strides = [1, 1]} : vector<32x8xbf16> to vector<8x8xbf16>
    %cst_15 = arith.constant dense<0.000000e+00> : vector<8x16xf32>
    %51 = tpu.matmul %50, %27, %cst_15 {dimension_numbers = #tpu.dot_dimension_numbers<[1], [0], [0], [1], [0, 0, 1, 1], [], []>} : vector<8x8xbf16>, vector<8x16xbf16>, vector<8x16xf32> -> vector<8x16xf32>
    %52 = tpu.concatenate %49, %51 in 1 : vector<8x16xf32>, vector<8x16xf32> -> vector<8x32xf32>
    %53 = vector.extract_strided_slice %47 {offsets = [16, 0], sizes = [8, 8], strides = [1, 1]} : vector<32x8xbf16> to vector<8x8xbf16>
    %cst_16 = arith.constant dense<0.000000e+00> : vector<8x16xf32>
    %54 = tpu.matmul %53, %31, %cst_16 {dimension_numbers = #tpu.dot_dimension_numbers<[1], [0], [0], [1], [0, 0, 1, 1], [], []>} : vector<8x8xbf16>, vector<8x16xbf16>, vector<8x16xf32> -> vector<8x16xf32>
    %55 = vector.extract_strided_slice %47 {offsets = [24, 0], sizes = [8, 8], strides = [1, 1]} : vector<32x8xbf16> to vector<8x8xbf16>
    %cst_17 = arith.constant dense<0.000000e+00> : vector<8x16xf32>
    %56 = tpu.matmul %55, %35, %cst_17 {dimension_numbers = #tpu.dot_dimension_numbers<[1], [0], [0], [1], [0, 0, 1, 1], [], []>} : vector<8x8xbf16>, vector<8x16xbf16>, vector<8x16xf32> -> vector<8x16xf32>
    %57 = tpu.concatenate %54, %56 in 1 : vector<8x16xf32>, vector<8x16xf32> -> vector<8x32xf32>
    %58 = tpu.concatenate %52, %57 in 0 : vector<8x32xf32>, vector<8x32xf32> -> vector<16x32xf32>
    %59 = arith.truncf %58 : vector<16x32xf32> to vector<16x32xbf16>
    %60 = vector.extract_strided_slice %1 {offsets = [0, 96], sizes = [32, 32], strides = [1, 1]} : vector<32x192xbf16> to vector<32x32xbf16>
    %cst_18 = arith.constant dense<0.000000e+00> : vector<16x32xf32>
    %61 = tpu.matmul %59, %60, %cst_18 {dimension_numbers = #tpu.dot_dimension_numbers<[1], [0], [0], [1], [0, 0, 1, 1], [], []>} : vector<16x32xbf16>, vector<32x32xbf16>, vector<16x32xf32> -> vector<16x32xf32>
    %62 = arith.addf %0, %61 : vector<16x32xf32>
    %cst_19 = arith.constant dense<0.000000e+00> : vector<16xf32>
    %63 = vector.multi_reduction <add>, %62, %cst_19 [1] : vector<16x32xf32> to vector<16xf32>
    %64 = vector.shape_cast %63 : vector<16xf32> to vector<16x1xf32>
    %cst_20 = arith.constant 3.200000e+01 : f32
    %65 = vector.broadcast %cst_20 : f32 to vector<16x1xf32>
    %66 = arith.divf %64, %65 : vector<16x1xf32>
    %67 = vector.broadcast %66 : vector<16x1xf32> to vector<16x32xf32>
    %68 = arith.subf %62, %67 : vector<16x32xf32>
    %69 = arith.mulf %68, %68 : vector<16x32xf32>
    %cst_21 = arith.constant dense<0.000000e+00> : vector<16xf32>
    %70 = vector.multi_reduction <add>, %69, %cst_21 [1] : vector<16x32xf32> to vector<16xf32>
    %71 = vector.shape_cast %70 : vector<16xf32> to vector<16x1xf32>
    %cst_22 = arith.constant 3.200000e+01 : f32
    %72 = vector.broadcast %cst_22 : f32 to vector<16x1xf32>
    %73 = arith.divf %71, %72 : vector<16x1xf32>
    %74 = vector.broadcast %66 : vector<16x1xf32> to vector<16x32xf32>
    %75 = arith.subf %62, %74 : vector<16x32xf32>
    %cst_23 = arith.constant 9.99999974E-6 : f32
    %76 = vector.broadcast %cst_23 : f32 to vector<16x1xf32>
    %77 = arith.addf %73, %76 : vector<16x1xf32>
    %78 = math.rsqrt %77 : vector<16x1xf32>
    %79 = vector.broadcast %78 : vector<16x1xf32> to vector<16x32xf32>
    %80 = arith.mulf %75, %79 : vector<16x32xf32>
    %81 = vector.broadcast %4 : vector<1x32xf32> to vector<16x32xf32>
    %82 = arith.mulf %80, %81 : vector<16x32xf32>
    %83 = vector.broadcast %5 : vector<1x32xf32> to vector<16x32xf32>
    %84 = arith.addf %82, %83 : vector<16x32xf32>
    %85 = arith.truncf %84 : vector<16x32xf32> to vector<16x32xbf16>
    %86 = vector.extract_strided_slice %1 {offsets = [0, 128], sizes = [32, 64], strides = [1, 1]} : vector<32x192xbf16> to vector<32x64xbf16>
    %cst_24 = arith.constant dense<0.000000e+00> : vector<16x64xf32>
    %87 = tpu.matmul %85, %86, %cst_24 {dimension_numbers = #tpu.dot_dimension_numbers<[1], [0], [0], [1], [0, 0, 1, 1], [], []>} : vector<16x32xbf16>, vector<32x64xbf16>, vector<16x64xf32> -> vector<16x64xf32>
    %88 = vector.broadcast %6 : vector<1x64xf32> to vector<16x64xf32>
    %89 = arith.addf %87, %88 : vector<16x64xf32>
    %cst_25 = arith.constant 0.000000e+00 : f32
    %90 = vector.broadcast %cst_25 : f32 to vector<16x64xf32>
    %91 = arith.maximumf %89, %90 : vector<16x64xf32>
    %92 = arith.truncf %91 : vector<16x64xf32> to vector<16x64xbf16>
    %cst_26 = arith.constant dense<0.000000e+00> : vector<16x32xf32>
    %93 = tpu.matmul %92, %2, %cst_26 {dimension_numbers = #tpu.dot_dimension_numbers<[1], [0], [0], [1], [0, 0, 1, 1], [], []>} : vector<16x64xbf16>, vector<64x32xbf16>, vector<16x32xf32> -> vector<16x32xf32>
    %94 = vector.broadcast %7 : vector<1x32xf32> to vector<16x32xf32>
    %95 = arith.addf %93, %94 : vector<16x32xf32>
    %96 = arith.addf %84, %95 : vector<16x32xf32>
    %cst_27 = arith.constant dense<0.000000e+00> : vector<16xf32>
    %97 = vector.multi_reduction <add>, %96, %cst_27 [1] : vector<16x32xf32> to vector<16xf32>
    %98 = vector.shape_cast %97 : vector<16xf32> to vector<16x1xf32>
    %cst_28 = arith.constant 3.200000e+01 : f32
    %99 = vector.broadcast %cst_28 : f32 to vector<16x1xf32>
    %100 = arith.divf %98, %99 : vector<16x1xf32>
    %101 = vector.broadcast %100 : vector<16x1xf32> to vector<16x32xf32>
    %102 = arith.subf %96, %101 : vector<16x32xf32>
    %103 = arith.mulf %102, %102 : vector<16x32xf32>
    %cst_29 = arith.constant dense<0.000000e+00> : vector<16xf32>
    %104 = vector.multi_reduction <add>, %103, %cst_29 [1] : vector<16x32xf32> to vector<16xf32>
    %105 = vector.shape_cast %104 : vector<16xf32> to vector<16x1xf32>
    %cst_30 = arith.constant 3.200000e+01 : f32
    %106 = vector.broadcast %cst_30 : f32 to vector<16x1xf32>
    %107 = arith.divf %105, %106 : vector<16x1xf32>
    %108 = vector.broadcast %100 : vector<16x1xf32> to vector<16x32xf32>
    %109 = arith.subf %96, %108 : vector<16x32xf32>
    %cst_31 = arith.constant 9.99999974E-6 : f32
    %110 = vector.broadcast %cst_31 : f32 to vector<16x1xf32>
    %111 = arith.addf %107, %110 : vector<16x1xf32>
    %112 = math.rsqrt %111 : vector<16x1xf32>
    %113 = vector.broadcast %112 : vector<16x1xf32> to vector<16x32xf32>
    %114 = arith.mulf %109, %113 : vector<16x32xf32>
    %115 = vector.broadcast %8 : vector<1x32xf32> to vector<16x32xf32>
    %116 = arith.mulf %114, %115 : vector<16x32xf32>
    %117 = vector.broadcast %9 : vector<1x32xf32> to vector<16x32xf32>
    %118 = arith.addf %116, %117 : vector<16x32xf32>
    %c0_32 = arith.constant 0 : index
    %c0_33 = arith.constant 0 : index
    %119 = vector.load %arg4[%c0_32, %c0_33] : memref<16x32xf32, #tpu.memory_space<vmem>>, vector<16x32xf32>
    tpu.vector_store %arg4[%c0_32, %c0_33], %118 {strides = array<i32>} : memref<16x32xf32, #tpu.memory_space<vmem>>, vector<16x32xf32>,
    return
  }
}

</mosaic_0001>

<llo_original>
// kernel: encoder_layer.1
$region0: #{encoder_layer.1}
  #allocation0 [shape = 'u32[]', space=smem, size = 0x4, offset = 0x4, fixed_abs, tag = 'smem constant byte address 0x4 - core index']
  #allocation1 [shape = 'u32[144,128]{1,0:T(1,128)}', space=vmem, size = 0x12000, scoped, tag = 'internal scratch']
  %s0 = inlined_call_operand.vmem [shape: f32[16,32], index: 0, kind: input, shape index: {}]
  %s1 = inlined_call_operand.vmem [shape: bf16[32,192], index: 1, kind: input, shape index: {}]
  %s2 = inlined_call_operand.vmem [shape: bf16[64,32], index: 2, kind: input, shape index: {}]
  %s3 = inlined_call_operand.vmem [shape: f32[8,64], index: 3, kind: input, shape index: {}]
  %s4 = inlined_call_operand.vmem [shape: f32[16,32], index: 4, kind: output, shape index: {}]
  %s5 = sld [smem:[#allocation0]]
  $region26: #{encoder_layer.1} parent=0
    _
  %s7 = ssub.s32 1, %s5
  %s8 = scalar_select 0, %s7, %s5
  // Predicated region
  $region2: #{encoder_layer.1} parent=0 // pred_check
    _
  $region3: #{encoder_layer.1} parent=0 // pred_check_branch
    %10 = sbr.rel (0) target = $region5
  $region4: #{encoder_layer.1} parent=0 // pred_region
    _
  $region5: #{encoder_layer.1} parent=0 // pred_fallthru
    _
  // Predicated region
  $region6: #{encoder_layer.1} parent=0 // pred_check
    _
  $region7: #{encoder_layer.1} parent=0 // pred_check_branch
    %12 = sbr.rel (0) target = $region9
  $region8: #{encoder_layer.1} parent=0 // pred_region
    _
  $region9: #{encoder_layer.1} parent=0 // pred_fallthru
    _
  // Predicated region
  $region10: #{encoder_layer.1} parent=0 // pred_check
    _
  $region11: #{encoder_layer.1} parent=0 // pred_check_branch
    %14 = sbr.rel (0) target = $region13
  $region12: #{encoder_layer.1} parent=0 // pred_region
    _
  $region13: #{encoder_layer.1} parent=0 // pred_fallthru
    _
  // Predicated region
  $region14: #{encoder_layer.1} parent=0 // pred_check
    _
  $region15: #{encoder_layer.1} parent=0 // pred_check_branch
    %16 = sbr.rel (0) target = $region17
  $region16: #{encoder_layer.1} parent=0 // pred_region
    _
  $region17: #{encoder_layer.1} parent=0 // pred_fallthru
    _
  %v18 = vld [vmem:[%s0] sm:$0xff]
  %v19 = vld [vmem:[%s0 + $0x8] sm:$0xff]
  %v20 = vld [vmem:[%s1] sm:$0xff]
  %v21 = vld [vmem:[%s1 + $0x8] sm:$0xff]
  %v22 = vld [vmem:[%s1 + $0x10] sm:$0xff]
  %v23 = vld [vmem:[%s1 + $0x18] sm:$0xff]
  %v24 = vld [vmem:[%s2] sm:$0xf]
  %v25 = vld [vmem:[%s2 + $0x4] sm:$0xf]
  %v26 = vld [vmem:[%s2 + $0x8] sm:$0xf]
  %v27 = vld [vmem:[%s2 + $0xc] sm:$0xf]
  %v28 = vld [vmem:[%s2 + $0x10] sm:$0xf]
  %v29 = vld [vmem:[%s2 + $0x14] sm:$0xf]
  %v30 = vld [vmem:[%s2 + $0x18] sm:$0xf]
  %v31 = vld [vmem:[%s2 + $0x1c] sm:$0xf]
  %v32 = vld [vmem:[%s3] sm:$0xff]
  %v33 = vpack.c.bf16 %v19, %v18
  %v38 = vunpack.c.l.b16 %v20
  %v39 = vunpack.c.l.b16 %v21
  %v40 = vunpack.c.l.b16 %v22
  %v41 = vunpack.c.l.b16 %v23
  %v42 = vpack.c.b16 %v39, %v38
  %v43 = vpack.c.b16 %v41, %v40
  %vm46 = vcmask 261120
  %v48 = vsel %vm46, %v33, 0
  %50 = vmatprep.subr.bf16.mxu0 0
  %51 = vmatpush1.bf16.msra.mxu0 0
  %52 = vmatprep.subr.bf16.mxu0 0
  %53 = vmatpush1.bf16.msra.mxu0 0
  %54 = vmatprep.subr.bf16.mxu0 0
  %55 = vmatpush1.bf16.msra.mxu0 0
  %56 = vmatprep.subr.bf16.mxu0 0
  %57 = vmatpush1.bf16.msra.mxu0 0
  %58 = vmatprep.subr.bf16.mxu0 0
  %59 = vmatpush1.bf16.msra.mxu0 0
  %60 = vmatprep.subr.bf16.mxu0 0
  %61 = vmatpush1.bf16.msra.mxu0 0
  %62 = vmatprep.subr.bf16.mxu0 0
  %63 = vmatpush1.bf16.msra.mxu0 %v43
  %64 = vmatprep.subr.bf16.mxu0 0
  %65 = vmatpush1.bf16.msra.mxu0 %v42
  %66 = vmatprep.subr.bf16.mxu0 0
  %67 = vmatpush2.bf16.msra.mxu0 0
  %68 = vmatprep.subr.bf16.mxu0 0
  %69 = vmatpush2.bf16.msra.mxu0 0
  %70 = vmatprep.subr.bf16.mxu0 0
  %71 = vmatpush2.bf16.msra.mxu0 0
  %72 = vmatprep.subr.bf16.mxu0 0
  %73 = vmatpush2.bf16.msra.mxu0 0
  %74 = vmatprep.subr.bf16.mxu0 0
  %75 = vmatpush2.bf16.msra.mxu0 0
  %76 = vmatprep.subr.bf16.mxu0 0
  %77 = vmatpush2.bf16.msra.mxu0 0
  %78 = vmatprep.subr.bf16.mxu0 0
  %79 = vmatpush2.bf16.msra.mxu0 0
  %80 = vmatprep.subr.bf16.mxu0 0
  %81 = vmatpush2.bf16.msra.mxu0 0
  %82 = vmatprep.mubr.bf16.mxu0 0
  %83 = vmatmul.mubr.bf16.gmra.mxu0 %v48
  %v84 = vpop.f32.mrf.mxu0
  %v85 = vadd.f32 0.0, %v84
  %v86 = vpop.f32.mrf.mxu0
  %v87 = vpop.f32.mrf.mxu0
  %v88 = vadd.f32 0.0, %v87
  %v89 = vpop.f32.mrf.mxu0
  %90 = vdwg.mxu0
  %v91 = vmul.f32 %v85, 0.25
  %v92 = vmul.f32 %v88, 0.25
  %v93 = vpack.c.bf16 %v92, %v91
  %v94 = vpack.c.bf16 %v88, %v85
  %96 = vrot.lane.b32.xlu0 %v94, 96
  %v97 = vpop.permute.xlu0 %96
  %vm98 = vcmask 130048
  %v100 = vsel %vm98, %v93, 0
  %v103 = vsel %vm98, %v97, 0
  %105 = vmatprep.subr.bf16.mxu0 0
  %106 = vmatpush1.bf16.xpose.msra.mxu0 0
  %107 = vmatprep.subr.bf16.mxu0 0
  %108 = vmatpush1.bf16.xpose.msra.mxu0 0
  %109 = vmatprep.subr.bf16.mxu0 0
  %110 = vmatpush1.bf16.xpose.msra.mxu0 0
  %111 = vmatprep.subr.bf16.mxu0 0
  %112 = vmatpush1.bf16.xpose.msra.mxu0 0
  %113 = vmatprep.subr.bf16.mxu0 0
  %114 = vmatpush1.bf16.xpose.msra.mxu0 0
  %115 = vmatprep.subr.bf16.mxu0 0
  %116 = vmatpush1.bf16.xpose.msra.mxu0 0
  %117 = vmatprep.subr.bf16.mxu0 0
  %118 = vmatpush1.bf16.xpose.msra.mxu0 0
  %119 = vmatprep.subr.bf16.mxu0 0
  %120 = vmatpush1.bf16.xpose.msra.mxu0 %v103
  %121 = vmatprep.subr.bf16.mxu0 0
  %122 = vmatpush2.bf16.xpose.msra.mxu0 0
  %123 = vmatprep.subr.bf16.mxu0 0
  %124 = vmatpush2.bf16.xpose.msra.mxu0 0
  %125 = vmatprep.subr.bf16.mxu0 0
  %126 = vmatpush2.bf16.xpose.msra.mxu0 0
  %127 = vmatprep.subr.bf16.mxu0 0
  %128 = vmatpush2.bf16.xpose.msra.mxu0 0
  %129 = vmatprep.subr.bf16.mxu0 0
  %130 = vmatpush2.bf16.xpose.msra.mxu0 0
  %131 = vmatprep.subr.bf16.mxu0 0
  %132 = vmatpush2.bf16.xpose.msra.mxu0 0
  %133 = vmatprep.subr.bf16.mxu0 0
  %134 = vmatpush2.bf16.xpose.msra.mxu0 0
  %135 = vmatprep.subr.bf16.mxu0 0
  %136 = vmatpush2.bf16.xpose.msra.mxu0 0
  %137 = vmatprep.mubr.bf16.mxu0 0
  %138 = vmatmul.mubr.bf16.gmra.mxu0 %v100
  %v139 = vpop.f32.mrf.mxu0
  %v140 = vadd.f32 0.0, %v139
  %v141 = vpop.f32.mrf.mxu0
  %v142 = vpop.f32.mrf.mxu0
  %v143 = vpop.f32.mrf.mxu0
  %144 = vdwg.mxu0
  %146 = vrot.lane.b32.xlu0 %v93, 112
  %v147 = vpop.permute.xlu0 %146
  %148 = vrot.lane.b32.xlu0 %v94, 80
  %v149 = vpop.permute.xlu0 %148
  %v151 = vsel %vm98, %v147, 0
  %v154 = vsel %vm98, %v149, 0
  %156 = vmatprep.subr.bf16.mxu0 0
  %157 = vmatpush1.bf16.xpose.msra.mxu0 0
  %158 = vmatprep.subr.bf16.mxu0 0
  %159 = vmatpush1.bf16.xpose.msra.mxu0 0
  %160 = vmatprep.subr.bf16.mxu0 0
  %161 = vmatpush1.bf16.xpose.msra.mxu0 0
  %162 = vmatprep.subr.bf16.mxu0 0
  %163 = vmatpush1.bf16.xpose.msra.mxu0 0
  %164 = vmatprep.subr.bf16.mxu0 0
  %165 = vmatpush1.bf16.xpose.msra.mxu0 0
  %166 = vmatprep.subr.bf16.mxu0 0
  %167 = vmatpush1.bf16.xpose.msra.mxu0 0
  %168 = vmatprep.subr.bf16.mxu0 0
  %169 = vmatpush1.bf16.xpose.msra.mxu0 0
  %170 = vmatprep.subr.bf16.mxu0 0
  %171 = vmatpush1.bf16.xpose.msra.mxu0 %v154
  %172 = vmatprep.subr.bf16.mxu0 0
  %173 = vmatpush2.bf16.xpose.msra.mxu0 0
  %174 = vmatprep.subr.bf16.mxu0 0
  %175 = vmatpush2.bf16.xpose.msra.mxu0 0
  %176 = vmatprep.subr.bf16.mxu0 0
  %177 = vmatpush2.bf16.xpose.msra.mxu0 0
  %178 = vmatprep.subr.bf16.mxu0 0
  %179 = vmatpush2.bf16.xpose.msra.mxu0 0
  %180 = vmatprep.subr.bf16.mxu0 0
  %181 = vmatpush2.bf16.xpose.msra.mxu0 0
  %182 = vmatprep.subr.bf16.mxu0 0
  %183 = vmatpush2.bf16.xpose.msra.mxu0 0
  %184 = vmatprep.subr.bf16.mxu0 0
  %185 = vmatpush2.bf16.xpose.msra.mxu0 0
  %186 = vmatprep.subr.bf16.mxu0 0
  %187 = vmatpush2.bf16.xpose.msra.mxu0 0
  %188 = vmatprep.mubr.bf16.mxu0 0
  %189 = vmatmul.mubr.bf16.gmra.mxu0 %v151
  %v190 = vpop.f32.mrf.mxu0
  %v191 = vadd.f32 0.0, %v190
  %v192 = vpop.f32.mrf.mxu0
  %v193 = vpop.f32.mrf.mxu0
  %v194 = vpop.f32.mrf.mxu0
  %195 = vdwg.mxu0
  %v196 = vrot.slane %v93, 4
  %v197 = vrot.slane %v94, 4
  %198 = vrot.lane.b32.xlu0 %v197, 96
  %v199 = vpop.permute.xlu0 %198
  %v201 = vsel %vm98, %v196, 0
  %v204 = vsel %vm98, %v199, 0
  %206 = vmatprep.subr.bf16.mxu0 0
  %207 = vmatpush1.bf16.xpose.msra.mxu0 0
  %208 = vmatprep.subr.bf16.mxu0 0
  %209 = vmatpush1.bf16.xpose.msra.mxu0 0
  %210 = vmatprep.subr.bf16.mxu0 0
  %211 = vmatpush1.bf16.xpose.msra.mxu0 0
  %212 = vmatprep.subr.bf16.mxu0 0
  %213 = vmatpush1.bf16.xpose.msra.mxu0 0
  %214 = vmatprep.subr.bf16.mxu0 0
  %215 = vmatpush1.bf16.xpose.msra.mxu0 0
  %216 = vmatprep.subr.bf16.mxu0 0
  %217 = vmatpush1.bf16.xpose.msra.mxu0 0
  %218 = vmatprep.subr.bf16.mxu0 0
  %219 = vmatpush1.bf16.xpose.msra.mxu0 0
  %220 = vmatprep.subr.bf16.mxu0 0
  %221 = vmatpush1.bf16.xpose.msra.mxu0 %v204
  %222 = vmatprep.subr.bf16.mxu0 0
  %223 = vmatpush2.bf16.xpose.msra.mxu0 0
  %224 = vmatprep.subr.bf16.mxu0 0
  %225 = vmatpush2.bf16.xpose.msra.mxu0 0
  %226 = vmatprep.subr.bf16.mxu0 0
  %227 = vmatpush2.bf16.xpose.msra.mxu0 0
  %228 = vmatprep.subr.bf16.mxu0 0
  %229 = vmatpush2.bf16.xpose.msra.mxu0 0
  %230 = vmatprep.subr.bf16.mxu0 0
  %231 = vmatpush2.bf16.xpose.msra.mxu0 0
  %232 = vmatprep.subr.bf16.mxu0 0
  %233 = vmatpush2.bf16.xpose.msra.mxu0 0
  %234 = vmatprep.subr.bf16.mxu0 0
  %235 = vmatpush2.bf16.xpose.msra.mxu0 0
  %236 = vmatprep.subr.bf16.mxu0 0
  %237 = vmatpush2.bf16.xpose.msra.mxu0 0
  %238 = vmatprep.mubr.bf16.mxu0 0
  %239 = vmatmul.mubr.bf16.gmra.mxu0 %v201
  %v240 = vpop.f32.mrf.mxu0
  %v241 = vadd.f32 0.0, %v240
  %v242 = vpop.f32.mrf.mxu0
  %v243 = vpop.f32.mrf.mxu0
  %v244 = vpop.f32.mrf.mxu0
  %245 = vdwg.mxu0
  %246 = vrot.lane.b32.xlu0 %v196, 112
  %v247 = vpop.permute.xlu0 %246
  %248 = vrot.lane.b32.xlu0 %v197, 80
  %v249 = vpop.permute.xlu0 %248
  %v251 = vsel %vm98, %v247, 0
  %v254 = vsel %vm98, %v249, 0
  %256 = vmatprep.subr.bf16.mxu0 0
  %257 = vmatpush1.bf16.xpose.msra.mxu0 0
  %258 = vmatprep.subr.bf16.mxu0 0
  %259 = vmatpush1.bf16.xpose.msra.mxu0 0
  %260 = vmatprep.subr.bf16.mxu0 0
  %261 = vmatpush1.bf16.xpose.msra.mxu0 0
  %262 = vmatprep.subr.bf16.mxu0 0
  %263 = vmatpush1.bf16.xpose.msra.mxu0 0
  %264 = vmatprep.subr.bf16.mxu0 0
  %265 = vmatpush1.bf16.xpose.msra.mxu0 0
  %266 = vmatprep.subr.bf16.mxu0 0
  %267 = vmatpush1.bf16.xpose.msra.mxu0 0
  %268 = vmatprep.subr.bf16.mxu0 0
  %269 = vmatpush1.bf16.xpose.msra.mxu0 0
  %270 = vmatprep.subr.bf16.mxu0 0
  %271 = vmatpush1.bf16.xpose.msra.mxu0 %v254
  %272 = vmatprep.subr.bf16.mxu0 0
  %273 = vmatpush2.bf16.xpose.msra.mxu0 0
  %274 = vmatprep.subr.bf16.mxu0 0
  %275 = vmatpush2.bf16.xpose.msra.mxu0 0
  %276 = vmatprep.subr.bf16.mxu0 0
  %277 = vmatpush2.bf16.xpose.msra.mxu0 0
  %278 = vmatprep.subr.bf16.mxu0 0
  %279 = vmatpush2.bf16.xpose.msra.mxu0 0
  %280 = vmatprep.subr.bf16.mxu0 0
  %281 = vmatpush2.bf16.xpose.msra.mxu0 0
  %282 = vmatprep.subr.bf16.mxu0 0
  %283 = vmatpush2.bf16.xpose.msra.mxu0 0
  %284 = vmatprep.subr.bf16.mxu0 0
  %285 = vmatpush2.bf16.xpose.msra.mxu0 0
  %286 = vmatprep.subr.bf16.mxu0 0
  %287 = vmatpush2.bf16.xpose.msra.mxu0 0
  %288 = vmatprep.mubr.bf16.mxu0 0
  %289 = vmatmul.mubr.bf16.gmra.mxu0 %v251
  %v290 = vpop.f32.mrf.mxu0
  %v291 = vadd.f32 0.0, %v290
  %v292 = vpop.f32.mrf.mxu0
  %v293 = vpop.f32.mrf.mxu0
  %v294 = vpop.f32.mrf.mxu0
  %295 = vdwg.mxu0
  %vm296 = vcmask 64512
  %v297 = vsel %vm296, %v140, -inf
  %298 = vmax.xlane.f32.xlu0 %v297
  %v299 = vpop.xlane.xlu0 %298
  %v300 = vsel %vm296, %v191, -inf
  %301 = vmax.xlane.f32.xlu0 %v300
  %v302 = vpop.xlane.xlu0 %301
  %v303 = vsel %vm296, %v241, -inf
  %304 = vmax.xlane.f32.xlu0 %v303
  %v305 = vpop.xlane.xlu0 %304
  %v306 = vsel %vm296, %v291, -inf
  %307 = vmax.xlane.f32.xlu0 %v306
  %v308 = vpop.xlane.xlu0 %307
  %v309 = vsub.f32 %v140, %v299
  %v310 = vsub.f32 %v191, %v302
  %v311 = vsub.f32 %v241, %v305
  %v312 = vsub.f32 %v291, %v308
  %v313 = vmul.f32 %v309, 1.442695
  %v314 = vpow.pop %v313
  %v315 = vmul.f32 %v310, 1.442695
  %v316 = vpow.pop %v315
  %v317 = vmul.f32 %v311, 1.442695
  %v318 = vpow.pop %v317
  %v319 = vmul.f32 %v312, 1.442695
  %v320 = vpow.pop %v319
  %v321 = vsel %vm296, %v314, 0.0
  %322 = vadd.xlane.f32.xlu0 %v321
  %v323 = vpop.xlane.xlu0 %322
  %v324 = vsel %vm296, %v316, 0.0
  %325 = vadd.xlane.f32.xlu0 %v324
  %v326 = vpop.xlane.xlu0 %325
  %v327 = vsel %vm296, %v318, 0.0
  %328 = vadd.xlane.f32.xlu0 %v327
  %v329 = vpop.xlane.xlu0 %328
  %v330 = vsel %vm296, %v320, 0.0
  %331 = vadd.xlane.f32.xlu0 %v330
  %v332 = vpop.xlane.xlu0 %331
  %v333 = vrcp.pop %v323
  %v334 = vmul.f32 %v314, %v333
  %v335 = vrcp.pop %v326
  %v336 = vmul.f32 %v316, %v335
  %v337 = vrcp.pop %v329
  %v338 = vmul.f32 %v318, %v337
  %v339 = vrcp.pop %v332
  %v340 = vmul.f32 %v320, %v339
  %v341 = vpack.c.bf16 %v336, %v334
  %v342 = vpack.c.bf16 %v340, %v338
  %343 = vrot.lane.b32.xlu0 %v94, 64
  %v344 = vpop.permute.xlu0 %343
  %v346 = vsel %vm296, %v341, 0
  %vm348 = vcmask 1043456
  %v350 = vsel %vm348, %v344, 0
  %352 = vmatprep.subr.bf16.mxu0 0
  %353 = vmatpush1.bf16.msra.mxu0 0
  %354 = vmatprep.subr.bf16.mxu0 0
  %355 = vmatpush1.bf16.msra.mxu0 0
  %356 = vmatprep.subr.bf16.mxu0 0
  %357 = vmatpush1.bf16.msra.mxu0 0
  %358 = vmatprep.subr.bf16.mxu0 0
  %359 = vmatpush1.bf16.msra.mxu0 0
  %360 = vmatprep.subr.bf16.mxu0 0
  %361 = vmatpush1.bf16.msra.mxu0 0
  %362 = vmatprep.subr.bf16.mxu0 0
  %363 = vmatpush1.bf16.msra.mxu0 0
  %364 = vmatprep.subr.bf16.mxu0 0
  %365 = vmatpush1.bf16.msra.mxu0 0
  %366 = vmatprep.subr.bf16.mxu0 0
  %367 = vmatpush1.bf16.msra.mxu0 %v350
  %368 = vmatprep.subr.bf16.mxu0 0
  %369 = vmatpush2.bf16.msra.mxu0 0
  %370 = vmatprep.subr.bf16.mxu0 0
  %371 = vmatpush2.bf16.msra.mxu0 0
  %372 = vmatprep.subr.bf16.mxu0 0
  %373 = vmatpush2.bf16.msra.mxu0 0
  %374 = vmatprep.subr.bf16.mxu0 0
  %375 = vmatpush2.bf16.msra.mxu0 0
  %376 = vmatprep.subr.bf16.mxu0 0
  %377 = vmatpush2.bf16.msra.mxu0 0
  %378 = vmatprep.subr.bf16.mxu0 0
  %379 = vmatpush2.bf16.msra.mxu0 0
  %380 = vmatprep.subr.bf16.mxu0 0
  %381 = vmatpush2.bf16.msra.mxu0 0
  %382 = vmatprep.subr.bf16.mxu0 0
  %383 = vmatpush2.bf16.msra.mxu0 0
  %384 = vmatprep.mubr.bf16.mxu0 0
  %385 = vmatmul.mubr.bf16.gmra.mxu0 %v346
  %v386 = vpop.f32.mrf.mxu0
  %v387 = vadd.f32 0.0, %v386
  %v388 = vpop.f32.mrf.mxu0
  %v389 = vpop.f32.mrf.mxu0
  %v390 = vpop.f32.mrf.mxu0
  %391 = vdwg.mxu0
  %v393 = vrot.slane %v341, 4
  %394 = vrot.lane.b32.xlu0 %v94, 48
  %v395 = vpop.permute.xlu0 %394
  %v397 = vsel %vm296, %v393, 0
  %v400 = vsel %vm348, %v395, 0
  %402 = vmatprep.subr.bf16.mxu0 0
  %403 = vmatpush1.bf16.msra.mxu0 0
  %404 = vmatprep.subr.bf16.mxu0 0
  %405 = vmatpush1.bf16.msra.mxu0 0
  %406 = vmatprep.subr.bf16.mxu0 0
  %407 = vmatpush1.bf16.msra.mxu0 0
  %408 = vmatprep.subr.bf16.mxu0 0
  %409 = vmatpush1.bf16.msra.mxu0 0
  %410 = vmatprep.subr.bf16.mxu0 0
  %411 = vmatpush1.bf16.msra.mxu0 0
  %412 = vmatprep.subr.bf16.mxu0 0
  %413 = vmatpush1.bf16.msra.mxu0 0
  %414 = vmatprep.subr.bf16.mxu0 0
  %415 = vmatpush1.bf16.msra.mxu0 0
  %416 = vmatprep.subr.bf16.mxu0 0
  %417 = vmatpush1.bf16.msra.mxu0 %v400
  %418 = vmatprep.subr.bf16.mxu0 0
  %419 = vmatpush2.bf16.msra.mxu0 0
  %420 = vmatprep.subr.bf16.mxu0 0
  %421 = vmatpush2.bf16.msra.mxu0 0
  %422 = vmatprep.subr.bf16.mxu0 0
  %423 = vmatpush2.bf16.msra.mxu0 0
  %424 = vmatprep.subr.bf16.mxu0 0
  %425 = vmatpush2.bf16.msra.mxu0 0
  %426 = vmatprep.subr.bf16.mxu0 0
  %427 = vmatpush2.bf16.msra.mxu0 0
  %428 = vmatprep.subr.bf16.mxu0 0
  %429 = vmatpush2.bf16.msra.mxu0 0
  %430 = vmatprep.subr.bf16.mxu0 0
  %431 = vmatpush2.bf16.msra.mxu0 0
  %432 = vmatprep.subr.bf16.mxu0 0
  %433 = vmatpush2.bf16.msra.mxu0 0
  %434 = vmatprep.mubr.bf16.mxu0 0
  %435 = vmatmul.mubr.bf16.gmra.mxu0 %v397
  %v436 = vpop.f32.mrf.mxu0
  %v437 = vadd.f32 0.0, %v436
  %v438 = vpop.f32.mrf.mxu0
  %v439 = vpop.f32.mrf.mxu0
  %v440 = vpop.f32.mrf.mxu0
  %441 = vdwg.mxu0
  %443 = vrot.lane.b32.xlu0 %v437, 16
  %v444 = vpop.permute.xlu0 %443
  %v446 = vsel %vm98, %v387, %v444
  %447 = vrot.lane.b32.xlu0 %v197, 64
  %v448 = vpop.permute.xlu0 %447
  %v450 = vsel %vm296, %v342, 0
  %v453 = vsel %vm348, %v448, 0
  %455 = vmatprep.subr.bf16.mxu0 0
  %456 = vmatpush1.bf16.msra.mxu0 0
  %457 = vmatprep.subr.bf16.mxu0 0
  %458 = vmatpush1.bf16.msra.mxu0 0
  %459 = vmatprep.subr.bf16.mxu0 0
  %460 = vmatpush1.bf16.msra.mxu0 0
  %461 = vmatprep.subr.bf16.mxu0 0
  %462 = vmatpush1.bf16.msra.mxu0 0
  %463 = vmatprep.subr.bf16.mxu0 0
  %464 = vmatpush1.bf16.msra.mxu0 0
  %465 = vmatprep.subr.bf16.mxu0 0
  %466 = vmatpush1.bf16.msra.mxu0 0
  %467 = vmatprep.subr.bf16.mxu0 0
  %468 = vmatpush1.bf16.msra.mxu0 0
  %469 = vmatprep.subr.bf16.mxu0 0
  %470 = vmatpush1.bf16.msra.mxu0 %v453
  %471 = vmatprep.subr.bf16.mxu0 0
  %472 = vmatpush2.bf16.msra.mxu0 0
  %473 = vmatprep.subr.bf16.mxu0 0
  %474 = vmatpush2.bf16.msra.mxu0 0
  %475 = vmatprep.subr.bf16.mxu0 0
  %476 = vmatpush2.bf16.msra.mxu0 0
  %477 = vmatprep.subr.bf16.mxu0 0
  %478 = vmatpush2.bf16.msra.mxu0 0
  %479 = vmatprep.subr.bf16.mxu0 0
  %480 = vmatpush2.bf16.msra.mxu0 0
  %481 = vmatprep.subr.bf16.mxu0 0
  %482 = vmatpush2.bf16.msra.mxu0 0
  %483 = vmatprep.subr.bf16.mxu0 0
  %484 = vmatpush2.bf16.msra.mxu0 0
  %485 = vmatprep.subr.bf16.mxu0 0
  %486 = vmatpush2.bf16.msra.mxu0 0
  %487 = vmatprep.mubr.bf16.mxu0 0
  %488 = vmatmul.mubr.bf16.gmra.mxu0 %v450
  %v489 = vpop.f32.mrf.mxu0
  %v490 = vadd.f32 0.0, %v489
  %v491 = vpop.f32.mrf.mxu0
  %v492 = vpop.f32.mrf.mxu0
  %v493 = vpop.f32.mrf.mxu0
  %494 = vdwg.mxu0
  %v496 = vrot.slane %v342, 4
  %497 = vrot.lane.b32.xlu0 %v197, 48
  %v498 = vpop.permute.xlu0 %497
  %v500 = vsel %vm296, %v496, 0
  %v503 = vsel %vm348, %v498, 0
  %505 = vmatprep.subr.bf16.mxu0 0
  %506 = vmatpush1.bf16.msra.mxu0 0
  %507 = vmatprep.subr.bf16.mxu0 0
  %508 = vmatpush1.bf16.msra.mxu0 0
  %509 = vmatprep.subr.bf16.mxu0 0
  %510 = vmatpush1.bf16.msra.mxu0 0
  %511 = vmatprep.subr.bf16.mxu0 0
  %512 = vmatpush1.bf16.msra.mxu0 0
  %513 = vmatprep.subr.bf16.mxu0 0
  %514 = vmatpush1.bf16.msra.mxu0 0
  %515 = vmatprep.subr.bf16.mxu0 0
  %516 = vmatpush1.bf16.msra.mxu0 0
  %517 = vmatprep.subr.bf16.mxu0 0
  %518 = vmatpush1.bf16.msra.mxu0 0
  %519 = vmatprep.subr.bf16.mxu0 0
  %520 = vmatpush1.bf16.msra.mxu0 %v503
  %521 = vmatprep.subr.bf16.mxu0 0
  %522 = vmatpush2.bf16.msra.mxu0 0
  %523 = vmatprep.subr.bf16.mxu0 0
  %524 = vmatpush2.bf16.msra.mxu0 0
  %525 = vmatprep.subr.bf16.mxu0 0
  %526 = vmatpush2.bf16.msra.mxu0 0
  %527 = vmatprep.subr.bf16.mxu0 0
  %528 = vmatpush2.bf16.msra.mxu0 0
  %529 = vmatprep.subr.bf16.mxu0 0
  %530 = vmatpush2.bf16.msra.mxu0 0
  %531 = vmatprep.subr.bf16.mxu0 0
  %532 = vmatpush2.bf16.msra.mxu0 0
  %533 = vmatprep.subr.bf16.mxu0 0
  %534 = vmatpush2.bf16.msra.mxu0 0
  %535 = vmatprep.subr.bf16.mxu0 0
  %536 = vmatpush2.bf16.msra.mxu0 0
  %537 = vmatprep.mubr.bf16.mxu0 0
  %538 = vmatmul.mubr.bf16.gmra.mxu0 %v500
  %v539 = vpop.f32.mrf.mxu0
  %v540 = vadd.f32 0.0, %v539
  %v541 = vpop.f32.mrf.mxu0
  %v542 = vpop.f32.mrf.mxu0
  %v543 = vpop.f32.mrf.mxu0
  %544 = vdwg.mxu0
  %546 = vrot.lane.b32.xlu0 %v540, 16
  %v547 = vpop.permute.xlu0 %546
  %v549 = vsel %vm98, %v490, %v547
  %v550 = vpack.c.bf16 %v549, %v446
  %551 = vrot.lane.b32.xlu0 %v42, 32
  %v552 = vpop.permute.xlu0 %551
  %553 = vrot.lane.b32.xlu0 %v43, 32
  %v554 = vpop.permute.xlu0 %553
  %v558 = vsel %vm46, %v550, 0
  %560 = vmatprep.subr.bf16.mxu0 0
  %561 = vmatpush1.bf16.msra.mxu0 0
  %562 = vmatprep.subr.bf16.mxu0 0
  %563 = vmatpush1.bf16.msra.mxu0 0
  %564 = vmatprep.subr.bf16.mxu0 0
  %565 = vmatpush1.bf16.msra.mxu0 0
  %566 = vmatprep.subr.bf16.mxu0 0
  %567 = vmatpush1.bf16.msra.mxu0 0
  %568 = vmatprep.subr.bf16.mxu0 0
  %569 = vmatpush1.bf16.msra.mxu0 0
  %570 = vmatprep.subr.bf16.mxu0 0
  %571 = vmatpush1.bf16.msra.mxu0 0
  %572 = vmatprep.subr.bf16.mxu0 0
  %573 = vmatpush1.bf16.msra.mxu0 %v554
  %574 = vmatprep.subr.bf16.mxu0 0
  %575 = vmatpush1.bf16.msra.mxu0 %v552
  %576 = vmatprep.subr.bf16.mxu0 0
  %577 = vmatpush2.bf16.msra.mxu0 0
  %578 = vmatprep.subr.bf16.mxu0 0
  %579 = vmatpush2.bf16.msra.mxu0 0
  %580 = vmatprep.subr.bf16.mxu0 0
  %581 = vmatpush2.bf16.msra.mxu0 0
  %582 = vmatprep.subr.bf16.mxu0 0
  %583 = vmatpush2.bf16.msra.mxu0 0
  %584 = vmatprep.subr.bf16.mxu0 0
  %585 = vmatpush2.bf16.msra.mxu0 0
  %586 = vmatprep.subr.bf16.mxu0 0
  %587 = vmatpush2.bf16.msra.mxu0 0
  %588 = vmatprep.subr.bf16.mxu0 0
  %589 = vmatpush2.bf16.msra.mxu0 0
  %590 = vmatprep.subr.bf16.mxu0 0
  %591 = vmatpush2.bf16.msra.mxu0 0
  %592 = vmatprep.mubr.bf16.mxu0 0
  %593 = vmatmul.mubr.bf16.gmra.mxu0 %v558
  %v594 = vpop.f32.mrf.mxu0
  %v595 = vadd.f32 0.0, %v594
  %v596 = vpop.f32.mrf.mxu0
  %v597 = vpop.f32.mrf.mxu0
  %v598 = vadd.f32 0.0, %v597
  %v599 = vpop.f32.mrf.mxu0
  %600 = vdwg.mxu0
  %v601 = vadd.f32 %v18, %v595
  %v602 = vadd.f32 %v19, %v598
  %v603 = vsel %vm46, %v601, 0.0
  %604 = vadd.xlane.f32.xlu0 %v603
  %v605 = vpop.xlane.xlu0 %604
  %v606 = vsel %vm46, %v602, 0.0
  %607 = vadd.xlane.f32.xlu0 %v606
  %v608 = vpop.xlane.xlu0 %607
  %v609 = vrcp.pop 32.0
  %v610 = vmul.f32 %v605, %v609
  %v611 = vmul.f32 %v608, %v609
  %v612 = vsub.f32 %v601, %v610
  %v613 = vsub.f32 %v602, %v611
  %v614 = vmul.f32 %v612, %v612
  %v615 = vmul.f32 %v613, %v613
  %v616 = vsel %vm46, %v614, 0.0
  %617 = vadd.xlane.f32.xlu0 %v616
  %v618 = vpop.xlane.xlu0 %617
  %v619 = vsel %vm46, %v615, 0.0
  %620 = vadd.xlane.f32.xlu0 %v619
  %v621 = vpop.xlane.xlu0 %620
  %v622 = vmul.f32 %v618, %v609
  %v623 = vmul.f32 %v621, %v609
  %v624 = vadd.f32 %v622, 1e-05
  %v625 = vadd.f32 %v623, 1e-05
  %v626 = vrsqrt.pop %v624
  %v627 = vrsqrt.pop %v625
  %v628 = vmul.f32 %v612, %v626
  %v629 = vmul.f32 %v613, %v627
  %v630 = vlaneseq
  %v631 = vshrl.u32 %v630, 7
  %v632 = vsub.s32 0, %v631
  %v633 = vrot.slane %v32, %v632
  %v634 = vmul.f32 %v628, %v633
  %v635 = vmul.f32 %v629, %v633
  %v636 = vlaneseq
  %v637 = vshrl.u32 %v636, 7
  %v638 = vsub.s32 1, %v637
  %v639 = vrot.slane %v32, %v638
  %v640 = vadd.f32 %v634, %v639
  %v641 = vadd.f32 %v635, %v639
  %v642 = vpack.c.bf16 %v641, %v640
  %v643 = vlaneseq
  %v644 = vshrl.u32 %v643, 7
  %v645 = vsub.s32 2, %v644
  %v646 = vrot.slane %v32, %v645
  %v647 = vunpack.c.h.b16 %v20
  %v648 = vunpack.c.h.b16 %v21
  %v649 = vunpack.c.h.b16 %v22
  %v650 = vunpack.c.h.b16 %v23
  %v651 = vpack.c.b16 %v648, %v647
  %v652 = vpack.c.b16 %v650, %v649
  %v656 = vsel %vm46, %v642, 0
  %658 = vmatprep.subr.bf16.mxu0 0
  %659 = vmatpush1.bf16.msra.mxu0 0
  %660 = vmatprep.subr.bf16.mxu0 0
  %661 = vmatpush1.bf16.msra.mxu0 0
  %662 = vmatprep.subr.bf16.mxu0 0
  %663 = vmatpush1.bf16.msra.mxu0 0
  %664 = vmatprep.subr.bf16.mxu0 0
  %665 = vmatpush1.bf16.msra.mxu0 0
  %666 = vmatprep.subr.bf16.mxu0 0
  %667 = vmatpush1.bf16.msra.mxu0 0
  %668 = vmatprep.subr.bf16.mxu0 0
  %669 = vmatpush1.bf16.msra.mxu0 0
  %670 = vmatprep.subr.bf16.mxu0 0
  %671 = vmatpush1.bf16.msra.mxu0 %v652
  %672 = vmatprep.subr.bf16.mxu0 0
  %673 = vmatpush1.bf16.msra.mxu0 %v651
  %674 = vmatprep.subr.bf16.mxu0 0
  %675 = vmatpush2.bf16.msra.mxu0 0
  %676 = vmatprep.subr.bf16.mxu0 0
  %677 = vmatpush2.bf16.msra.mxu0 0
  %678 = vmatprep.subr.bf16.mxu0 0
  %679 = vmatpush2.bf16.msra.mxu0 0
  %680 = vmatprep.subr.bf16.mxu0 0
  %681 = vmatpush2.bf16.msra.mxu0 0
  %682 = vmatprep.subr.bf16.mxu0 0
  %683 = vmatpush2.bf16.msra.mxu0 0
  %684 = vmatprep.subr.bf16.mxu0 0
  %685 = vmatpush2.bf16.msra.mxu0 0
  %686 = vmatprep.subr.bf16.mxu0 0
  %687 = vmatpush2.bf16.msra.mxu0 0
  %688 = vmatprep.subr.bf16.mxu0 0
  %689 = vmatpush2.bf16.msra.mxu0 0
  %690 = vmatprep.mubr.bf16.mxu0 0
  %691 = vmatmul.mubr.bf16.gmra.mxu0 %v656
  %v692 = vpop.f32.mrf.mxu0
  %v693 = vadd.f32 %v646, %v692
  %v694 = vpop.f32.mrf.mxu0
  %v695 = vpop.f32.mrf.mxu0
  %v696 = vadd.f32 %v646, %v695
  %v697 = vpop.f32.mrf.mxu0
  %698 = vdwg.mxu0
  %v699 = vmax.f32 %v693, 0.0
  %v700 = vmax.f32 %v696, 0.0
  %v701 = vpack.c.bf16 %v700, %v699
  %v702 = vlaneseq
  %v703 = vshrl.u32 %v702, 7
  %v704 = vsub.s32 3, %v703
  %v705 = vrot.slane %v32, %v704
  %v714 = vunpack.c.l.b16 %v24
  %v715 = vunpack.c.l.b16 %v25
  %v716 = vunpack.c.l.b16 %v26
  %v717 = vunpack.c.l.b16 %v27
  %v718 = vunpack.c.l.b16 %v28
  %v719 = vunpack.c.l.b16 %v29
  %v720 = vunpack.c.l.b16 %v30
  %v721 = vunpack.c.l.b16 %v31
  %v722 = vpack.c.b16 %v715, %v714
  %v723 = vpack.c.b16 %v717, %v716
  %v724 = vpack.c.b16 %v719, %v718
  %v725 = vpack.c.b16 %v721, %v720
  %vm730 = vcmask 523264
  %v732 = vsel %vm730, %v701, 0
  %734 = vmatprep.subr.bf16.mxu0 0
  %735 = vmatpush1.bf16.msra.mxu0 0
  %736 = vmatprep.subr.bf16.mxu0 0
  %737 = vmatpush1.bf16.msra.mxu0 0
  %738 = vmatprep.subr.bf16.mxu0 0
  %739 = vmatpush1.bf16.msra.mxu0 0
  %740 = vmatprep.subr.bf16.mxu0 0
  %741 = vmatpush1.bf16.msra.mxu0 0
  %742 = vmatprep.subr.bf16.mxu0 0
  %743 = vmatpush1.bf16.msra.mxu0 %v725
  %744 = vmatprep.subr.bf16.mxu0 0
  %745 = vmatpush1.bf16.msra.mxu0 %v724
  %746 = vmatprep.subr.bf16.mxu0 0
  %747 = vmatpush1.bf16.msra.mxu0 %v723
  %748 = vmatprep.subr.bf16.mxu0 0
  %749 = vmatpush1.bf16.msra.mxu0 %v722
  %750 = vmatprep.subr.bf16.mxu0 0
  %751 = vmatpush2.bf16.msra.mxu0 0
  %752 = vmatprep.subr.bf16.mxu0 0
  %753 = vmatpush2.bf16.msra.mxu0 0
  %754 = vmatprep.subr.bf16.mxu0 0
  %755 = vmatpush2.bf16.msra.mxu0 0
  %756 = vmatprep.subr.bf16.mxu0 0
  %757 = vmatpush2.bf16.msra.mxu0 0
  %758 = vmatprep.subr.bf16.mxu0 0
  %759 = vmatpush2.bf16.msra.mxu0 0
  %760 = vmatprep.subr.bf16.mxu0 0
  %761 = vmatpush2.bf16.msra.mxu0 0
  %762 = vmatprep.subr.bf16.mxu0 0
  %763 = vmatpush2.bf16.msra.mxu0 0
  %764 = vmatprep.subr.bf16.mxu0 0
  %765 = vmatpush2.bf16.msra.mxu0 0
  %766 = vmatprep.mubr.bf16.mxu0 0
  %767 = vmatmul.mubr.bf16.gmra.mxu0 %v732
  %v768 = vpop.f32.mrf.mxu0
  %v769 = vadd.f32 %v705, %v768
  %v770 = vpop.f32.mrf.mxu0
  %v771 = vpop.f32.mrf.mxu0
  %v772 = vadd.f32 %v705, %v771
  %v773 = vpop.f32.mrf.mxu0
  %774 = vdwg.mxu0
  %v775 = vadd.f32 %v640, %v769
  %v776 = vadd.f32 %v641, %v772
  %v777 = vsel %vm46, %v775, 0.0
  %778 = vadd.xlane.f32.xlu0 %v777
  %v779 = vpop.xlane.xlu0 %778
  %v780 = vsel %vm46, %v776, 0.0
  %781 = vadd.xlane.f32.xlu0 %v780
  %v782 = vpop.xlane.xlu0 %781
  %v783 = vmul.f32 %v779, %v609
  %v784 = vmul.f32 %v782, %v609
  %v785 = vsub.f32 %v775, %v783
  %v786 = vsub.f32 %v776, %v784
  %v787 = vmul.f32 %v785, %v785
  %v788 = vmul.f32 %v786, %v786
  %v789 = vsel %vm46, %v787, 0.0
  %790 = vadd.xlane.f32.xlu0 %v789
  %v791 = vpop.xlane.xlu0 %790
  %v792 = vsel %vm46, %v788, 0.0
  %793 = vadd.xlane.f32.xlu0 %v792
  %v794 = vpop.xlane.xlu0 %793
  %v795 = vmul.f32 %v791, %v609
  %v796 = vmul.f32 %v794, %v609
  %v797 = vadd.f32 %v795, 1e-05
  %v798 = vadd.f32 %v796, 1e-05
  %v799 = vrsqrt.pop %v797
  %v800 = vrsqrt.pop %v798
  %v801 = vmul.f32 %v785, %v799
  %v802 = vmul.f32 %v786, %v800
  %v803 = vlaneseq
  %v804 = vshrl.u32 %v803, 7
  %v805 = vsub.s32 4, %v804
  %v806 = vrot.slane %v32, %v805
  %v807 = vmul.f32 %v801, %v806
  %v808 = vmul.f32 %v802, %v806
  %v809 = vlaneseq
  %v810 = vshrl.u32 %v809, 7
  %v811 = vsub.s32 5, %v810
  %v812 = vrot.slane %v32, %v811
  %v813 = vadd.f32 %v807, %v812
  %v814 = vadd.f32 %v808, %v812
  %815 = vst.msk [vmem:[%s4] sm:$0xff] %vm46, %v813
  %816 = vst.msk [vmem:[%s4 + $0x8] sm:$0xff] %vm46, %v814
  // Predicated region
  $region18: #{encoder_layer.1} parent=0 // pred_check
    _
  $region19: #{encoder_layer.1} parent=0 // pred_check_branch
    %818 = sbr.rel (0) target = $region21
  $region20: #{encoder_layer.1} parent=0 // pred_region
    _
  $region21: #{encoder_layer.1} parent=0 // pred_fallthru
    _
  // Predicated region
  $region22: #{encoder_layer.1} parent=0 // pred_check
    _
  $region23: #{encoder_layer.1} parent=0 // pred_check_branch
    %820 = sbr.rel (0) target = $region25
  $region24: #{encoder_layer.1} parent=0 // pred_region
    _
  $region25: #{encoder_layer.1} parent=0 // pred_fallthru
    _

</llo_original>
